<compile_context>
chip_gen: v7x
topology: tpu7x:2x2x1
jax: 0.10.0
libtpu: 0.0.40
codegen_flags: <defaults>
</compile_context>

<pallas_src>
import math

import jax
import jax.numpy as jnp
from jax.experimental import pallas as pl
from jax.experimental.pallas import tpu as pltpu


def _mixer_kernel(x_ref, w1_ref, b1_ref, w2_ref, b2_ref, o_ref):
    # x_ref/o_ref: (NB, C, TL);  w1: (M, C);  b1: (M, 1);  w2: (C, M);  b2: (C, 1)
    w1 = w1_ref[...]
    b1 = b1_ref[...]
    w2 = w2_ref[...]
    b2 = b2_ref[...]
    for b in range(x_ref.shape[0]):  # NB <= 8, static unroll
        x = x_ref[b].astype(jnp.float32)                                    # (C, TL)
        h = jnp.maximum(jnp.dot(w1, x, preferred_element_type=jnp.float32) + b1, 0.0)
        y = jnp.dot(w2, h, preferred_element_type=jnp.float32) + b2
        o_ref[b] = (y + x).astype(o_ref.dtype)


def _vmem_capacity_bytes():
    """Physical VMEM per TensorCore; conservative 64 MiB (v7x) fallback."""
    try:
        info = pltpu.get_tpu_info()
        for name in ("vmem_capacity_bytes", "vmem_bytes", "vmem_size_bytes"):
            v = getattr(info, name, None)
            if v:
                return int(v)
    except Exception:
        pass
    return 64 << 20


def _plan_tiles(B, C, L, M, itemsize, vmem_limit):
    """Pick (NB, TL) so double-buffered in/out blocks + in-kernel f32
    temporaries + resident weights fit under `vmem_limit`, while each grid
    step streams a few MiB and the pipeline keeps enough steps."""
    f32 = 4
    # VMEM bytes per "column" (one batch row, one lane position) per step:
    #   double-buffered x-in + out blocks : 4 * C * itemsize
    #   f32 temporaries x_f32 / h / y     : (2*C + M) * 4
    per_col = 4 * C * itemsize + (2 * C + M) * f32
    # Resident params, conservatively counted as double-buffered.
    weight_bytes = 2 * (2 * C * M + M + C) * f32
    avail = max(vmem_limit - weight_bytes - (2 << 20), 1 << 20)
    max_cols = max(avail // per_col, 128)

    # Streaming target: ~8 MiB of x per step (HBM roofline saturates with
    # multi-MiB blocks), never above what fits in VMEM.
    target_cols = max((8 << 20) // max(C * itemsize, 1), 128)
    cols_cap = int(min(max_cols, target_cols))

    # Lane tile: full L when it fits (also satisfies the lane-layout rule when
    # L is not a multiple of 128), else the largest fitting multiple of 128.
    if L <= 128 or L <= cols_cap:
        tl = L
    else:
        tl = max((cols_cap // 128) * 128, 128)
    # Fold batch rows into the block (bounded static unroll in the kernel).
    nb = int(max(1, min(B, cols_cap // max(tl, 1), 8)))

    # Keep >= 8 steps for the software pipeline / both v7x cores when there is
    # enough data to be worth splitting further.
    if B * C * L * itemsize > (4 << 20):
        def n_steps(nb_, tl_):
            return ((B + nb_ - 1) // nb_) * ((L + tl_ - 1) // tl_)
        while n_steps(nb, tl) < 8:
            if nb > 1:
                nb //= 2
            elif tl > 128:
                new_tl = max(((tl // 2) // 128) * 128, 128)
                if new_tl == tl:
                    break
                tl = new_tl
            else:
                break
    return nb, tl


def simple_mixer(x, w1, b1, w2, b2, *, l_tile=None, nb_tile=None):
    """x: (B, C, L) with C = feature_dims[-1].  w1: (M, C), b1: (M,),
    w2: (C, M), b2: (C,)."""
    B, C, L = x.shape
    M = w1.shape[0]
    itemsize = x.dtype.itemsize

    cap = _vmem_capacity_bytes()
    # Explicit scoped VMEM limit with headroom below physical
    # (~45 MiB on v7x's 64 MiB, ~90 MiB on v5e/v6e's 128 MiB).
    vmem_limit = max(min(int(cap * 0.70), 96 << 20), 16 << 20)

    nb, tl = _plan_tiles(B, C, L, M, itemsize, vmem_limit)
    if l_tile is not None:
        tl = int(min(max(int(l_tile), 1), L))
    if nb_tile is not None:
        nb = int(min(max(int(nb_tile), 1), B))

    # Make sure the declared limit covers the chosen plan
    # (resident weights + double-buffered blocks + f32 temporaries).
    need = (2 * (2 * C * M + M + C) * 4
            + 4 * nb * C * tl * itemsize
            + nb * tl * (2 * C + M) * 4
            + (2 << 20))
    vmem_limit = int(min(max(vmem_limit, need), int(cap * 0.9)))

    # Biases oriented along the sublane axis -> lane-broadcast add in-kernel.
    b1c = b1.reshape(M, 1).astype(jnp.float32)
    b2c = b2.reshape(C, 1).astype(jnp.float32)

    bytes_x = x.size * itemsize
    cost = pl.CostEstimate(
        flops=4 * B * L * C * M,  # two (C,M)-sized GEMMs over B*L columns
        transcendentals=0,
        bytes_accessed=2 * bytes_x + (w1.size + w2.size + M + C) * 4,
    )

    return pl.pallas_call(
        _mixer_kernel,
        out_shape=jax.ShapeDtypeStruct((B, C, L), x.dtype),
        grid_spec=pltpu.PrefetchScalarGridSpec(
            num_scalar_prefetch=0,
            grid=(pl.cdiv(B, nb), pl.cdiv(L, tl)),
            in_specs=[
                pl.BlockSpec((nb, C, tl), lambda b, l: (b, 0, l)),  # x block
                pl.BlockSpec((M, C), lambda b, l: (0, 0)),          # W1, VMEM-resident
                pl.BlockSpec((M, 1), lambda b, l: (0, 0)),          # b1
                pl.BlockSpec((C, M), lambda b, l: (0, 0)),          # W2, VMEM-resident
                pl.BlockSpec((C, 1), lambda b, l: (0, 0)),          # b2
            ],
            out_specs=pl.BlockSpec((nb, C, tl), lambda b, l: (b, 0, l)),
        ),
        compiler_params=pltpu.CompilerParams(
            dimension_semantics=("parallel", "parallel"),
            vmem_limit_bytes=vmem_limit,
        ),
        cost_estimate=cost,
    )(x, w1.astype(jnp.float32), b1c, w2.astype(jnp.float32), b2c)


def _init_params(key, C, M):
    """Replicates SimpleMixer._init_weight deterministically.

    linear1.weight: kaiming_uniform_(a=sqrt(5)) -> U(-1/sqrt(fan_in), 1/sqrt(fan_in))
    linear1.bias / linear2.weight / linear2.bias: zeros
    """
    bound = 1.0 / math.sqrt(C)
    w1 = jax.random.uniform(key, (M, C), jnp.float32, minval=-bound, maxval=bound)
    b1 = jnp.zeros((M,), jnp.float32)
    w2 = jnp.zeros((C, M), jnp.float32)
    b2 = jnp.zeros((C,), jnp.float32)
    return w1, b1, w2, b2


def _rand_params(key, C, M, scale=0.05):
    k1, k2, k3, k4 = jax.random.split(key, 4)
    return (scale * jax.random.normal(k1, (M, C), jnp.float32),
            scale * jax.random.normal(k2, (M,), jnp.float32),
            scale * jax.random.normal(k3, (C, M), jnp.float32),
            scale * jax.random.normal(k4, (C,), jnp.float32))


def _reference(x, w1, b1, w2, b2):
    xt = jnp.transpose(x, (0, 2, 1))                       # (B, L, C)
    h = jnp.maximum(xt @ w1.T + b1, 0.0)                   # (B, L, M)
    y = h @ w2.T + b2                                      # (B, L, C)
    return jnp.transpose(y, (0, 2, 1)) + x                 # (B, C, L)


if __name__ == "__main__":
    key = jax.random.PRNGKey(0)
    kx, kp, kw2, kb2, kx2, kp2, kx3, kp3 = jax.random.split(key, 8)

    # --- tiny shape from the module spec: feature_dims[-1]=4, middle_dim=32 ---
    B, C, L, M = 2, 4, 16, 32
    x = jax.random.normal(kx, (B, C, L), jnp.float32)

    # Exact module init (linear2 is zero -> output == input).
    w1, b1, w2, b2 = _init_params(kp, C, M)
    out = simple_mixer(x, w1, b1, w2, b2)
    jax.block_until_ready(out)
    assert jnp.allclose(out, _reference(x, w1, b1, w2, b2), atol=1e-5, rtol=1e-5)

    # Non-zero linear2 so the full MLP + residual path is exercised numerically.
    w2_nz = 0.05 * jax.random.normal(kw2, (C, M), jnp.float32)
    b2_nz = 0.05 * jax.random.normal(kb2, (C,), jnp.float32)
    out2 = simple_mixer(x, w1, b1, w2_nz, b2_nz)
    jax.block_until_ready(out2)
    assert jnp.allclose(out2, _reference(x, w1, b1, w2_nz, b2_nz), atol=1e-5, rtol=1e-5)

    # --- moderate shape: single big block, batch folded, full-L lane tile ---
    B2, C2, L2, M2 = 2, 128, 512, 256
    x2 = jax.random.normal(kx2, (B2, C2, L2), jnp.float32)
    p2 = _rand_params(kp2, C2, M2)
    out3 = simple_mixer(x2, *p2)
    jax.block_until_ready(out3)
    assert jnp.allclose(out3, _reference(x2, *p2), atol=2e-3, rtol=2e-3)

    # --- forced tiling: partial L tile and partial batch block (masked paths) ---
    B3, C3, L3, M3 = 3, 8, 320, 32
    x3 = jax.random.normal(kx3, (B3, C3, L3), jnp.float32)
    p3 = _rand_params(kp3, C3, M3)
    out4 = simple_mixer(x3, *p3, l_tile=128, nb_tile=2)
    jax.block_until_ready(out4)
    assert jnp.allclose(out4, _reference(x3, *p3), atol=2e-3, rtol=2e-3)

    print("KERNEL_OK")
</pallas_src>

<mosaic_0001>
module attributes {stable_mosaic.version = 11 : i64} {
  func.func @_mixer_kernel(%arg0: i32, %arg1: i32, %arg2: memref<2x4x16xf32, #tpu.memory_space<vmem>>, %arg3: memref<32x4xf32, #tpu.memory_space<vmem>>, %arg4: memref<32x1xf32, #tpu.memory_space<vmem>>, %arg5: memref<4x32xf32, #tpu.memory_space<vmem>>, %arg6: memref<4x1xf32, #tpu.memory_space<vmem>>, %arg7: memref<2x4x16xf32, #tpu.memory_space<vmem>>) attributes {dimension_semantics = [#tpu.dimension_semantics<parallel>, #tpu.dimension_semantics<parallel>], iteration_bounds = array<i64: 1, 1>, scalar_prefetch = 0 : i64, scratch_operands = 0 : i64, tpu.core_type = #tpu.core_type<tc>, window_params = [{transform_indices = @transform_0, window_bounds = array<i64: 2, 4, 16>}, {pipeline_mode = #tpu.pipeline_mode<synchronous>, transform_indices = @transform_1, window_bounds = array<i64: 32, 4>}, {pipeline_mode = #tpu.pipeline_mode<synchronous>, transform_indices = @transform_2, window_bounds = array<i64: 32, 1>}, {pipeline_mode = #tpu.pipeline_mode<synchronous>, transform_indices = @transform_3, window_bounds = array<i64: 4, 32>}, {pipeline_mode = #tpu.pipeline_mode<synchronous>, transform_indices = @transform_4, window_bounds = array<i64: 4, 1>}, {transform_indices = @transform_5, window_bounds = array<i64: 2, 4, 16>}]} {
    %c0 = arith.constant 0 : index
    %c0_0 = arith.constant 0 : index
    %0 = vector.load %arg3[%c0, %c0_0] : memref<32x4xf32, #tpu.memory_space<vmem>>, vector<32x4xf32>
    %c0_1 = arith.constant 0 : index
    %c0_2 = arith.constant 0 : index
    %1 = vector.load %arg4[%c0_1, %c0_2] : memref<32x1xf32, #tpu.memory_space<vmem>>, vector<32x1xf32>
    %c0_3 = arith.constant 0 : index
    %c0_4 = arith.constant 0 : index
    %2 = vector.load %arg5[%c0_3, %c0_4] : memref<4x32xf32, #tpu.memory_space<vmem>>, vector<4x32xf32>
    %c0_5 = arith.constant 0 : index
    %c0_6 = arith.constant 0 : index
    %3 = vector.load %arg6[%c0_5, %c0_6] : memref<4x1xf32, #tpu.memory_space<vmem>>, vector<4x1xf32>
    %c0_7 = arith.constant 0 : index
    %c0_8 = arith.constant 0 : index
    %c0_9 = arith.constant 0 : index
    %4 = vector.load %arg2[%c0_7, %c0_8, %c0_9] : memref<2x4x16xf32, #tpu.memory_space<vmem>>, vector<1x4x16xf32>
    %5 = vector.shape_cast %4 : vector<1x4x16xf32> to vector<4x16xf32>
    %cst = arith.constant dense<0.000000e+00> : vector<32x16xf32>
    %6 = tpu.matmul %0, %5, %cst {dimension_numbers = #tpu.dot_dimension_numbers<[1], [0], [0], [1], [0, 0, 1, 1], [], []>} : vector<32x4xf32>, vector<4x16xf32>, vector<32x16xf32> -> vector<32x16xf32>
    %7 = vector.broadcast %1 : vector<32x1xf32> to vector<32x16xf32>
    %8 = arith.addf %6, %7 : vector<32x16xf32>
    %cst_10 = arith.constant 0.000000e+00 : f32
    %9 = vector.broadcast %cst_10 : f32 to vector<32x16xf32>
    %10 = arith.maximumf %8, %9 : vector<32x16xf32>
    %cst_11 = arith.constant dense<0.000000e+00> : vector<4x16xf32>
    %11 = tpu.matmul %2, %10, %cst_11 {dimension_numbers = #tpu.dot_dimension_numbers<[1], [0], [0], [1], [0, 0, 1, 1], [], []>} : vector<4x32xf32>, vector<32x16xf32>, vector<4x16xf32> -> vector<4x16xf32>
    %12 = vector.broadcast %3 : vector<4x1xf32> to vector<4x16xf32>
    %13 = arith.addf %11, %12 : vector<4x16xf32>
    %14 = arith.addf %13, %5 : vector<4x16xf32>
    %c0_12 = arith.constant 0 : index
    %c0_13 = arith.constant 0 : index
    %c0_14 = arith.constant 0 : index
    %15 = vector.load %arg7[%c0_12, %c0_13, %c0_14] : memref<2x4x16xf32, #tpu.memory_space<vmem>>, vector<1x4x16xf32>
    %16 = vector.shape_cast %15 : vector<1x4x16xf32> to vector<4x16xf32>
    %17 = vector.shape_cast %14 : vector<4x16xf32> to vector<1x4x16xf32>
    tpu.vector_store %arg7[%c0_12, %c0_13, %c0_14], %17 {strides = array<i32>} : memref<2x4x16xf32, #tpu.memory_space<vmem>>, vector<1x4x16xf32>,
    %c1 = arith.constant 1 : index
    %c0_15 = arith.constant 0 : index
    %c0_16 = arith.constant 0 : index
    %18 = vector.load %arg2[%c1, %c0_15, %c0_16] : memref<2x4x16xf32, #tpu.memory_space<vmem>>, vector<1x4x16xf32>
    %19 = vector.shape_cast %18 : vector<1x4x16xf32> to vector<4x16xf32>
    %cst_17 = arith.constant dense<0.000000e+00> : vector<32x16xf32>
    %20 = tpu.matmul %0, %19, %cst_17 {dimension_numbers = #tpu.dot_dimension_numbers<[1], [0], [0], [1], [0, 0, 1, 1], [], []>} : vector<32x4xf32>, vector<4x16xf32>, vector<32x16xf32> -> vector<32x16xf32>
    %21 = vector.broadcast %1 : vector<32x1xf32> to vector<32x16xf32>
    %22 = arith.addf %20, %21 : vector<32x16xf32>
    %cst_18 = arith.constant 0.000000e+00 : f32
    %23 = vector.broadcast %cst_18 : f32 to vector<32x16xf32>
    %24 = arith.maximumf %22, %23 : vector<32x16xf32>
    %cst_19 = arith.constant dense<0.000000e+00> : vector<4x16xf32>
    %25 = tpu.matmul %2, %24, %cst_19 {dimension_numbers = #tpu.dot_dimension_numbers<[1], [0], [0], [1], [0, 0, 1, 1], [], []>} : vector<4x32xf32>, vector<32x16xf32>, vector<4x16xf32> -> vector<4x16xf32>
    %26 = vector.broadcast %3 : vector<4x1xf32> to vector<4x16xf32>
    %27 = arith.addf %25, %26 : vector<4x16xf32>
    %28 = arith.addf %27, %19 : vector<4x16xf32>
    %c1_20 = arith.constant 1 : index
    %c0_21 = arith.constant 0 : index
    %c0_22 = arith.constant 0 : index
    %29 = vector.load %arg7[%c1_20, %c0_21, %c0_22] : memref<2x4x16xf32, #tpu.memory_space<vmem>>, vector<1x4x16xf32>
    %30 = vector.shape_cast %29 : vector<1x4x16xf32> to vector<4x16xf32>
    %31 = vector.shape_cast %28 : vector<4x16xf32> to vector<1x4x16xf32>
    tpu.vector_store %arg7[%c1_20, %c0_21, %c0_22], %31 {strides = array<i32>} : memref<2x4x16xf32, #tpu.memory_space<vmem>>, vector<1x4x16xf32>,
    return
  }
  func.func @transform_0(%arg0: i32, %arg1: i32) -> (i32, i32, i32) {
    %c0_i32 = arith.constant 0 : i32
    %c0_i32_0 = arith.constant 0 : i32
    return %arg0, %c0_i32, %arg1 : i32, i32, i32
  }
  func.func @transform_1(%arg0: i32, %arg1: i32) -> (i32, i32) {
    %c0_i32 = arith.constant 0 : i32
    %c0_i32_0 = arith.constant 0 : i32
    %c0_i32_1 = arith.constant 0 : i32
    return %c0_i32, %c0_i32_0 : i32, i32
  }
  func.func @transform_2(%arg0: i32, %arg1: i32) -> (i32, i32) {
    %c0_i32 = arith.constant 0 : i32
    %c0_i32_0 = arith.constant 0 : i32
    %c0_i32_1 = arith.constant 0 : i32
    return %c0_i32, %c0_i32_0 : i32, i32
  }
  func.func @transform_3(%arg0: i32, %arg1: i32) -> (i32, i32) {
    %c0_i32 = arith.constant 0 : i32
    %c0_i32_0 = arith.constant 0 : i32
    %c0_i32_1 = arith.constant 0 : i32
    return %c0_i32, %c0_i32_0 : i32, i32
  }
  func.func @transform_4(%arg0: i32, %arg1: i32) -> (i32, i32) {
    %c0_i32 = arith.constant 0 : i32
    %c0_i32_0 = arith.constant 0 : i32
    %c0_i32_1 = arith.constant 0 : i32
    return %c0_i32, %c0_i32_0 : i32, i32
  }
  func.func @transform_5(%arg0: i32, %arg1: i32) -> (i32, i32, i32) {
    %c0_i32 = arith.constant 0 : i32
    %c0_i32_0 = arith.constant 0 : i32
    return %arg0, %c0_i32, %arg1 : i32, i32, i32
  }
}

</mosaic_0001>

<llo_original>
// kernel: tpu_custom_call.1
$region0: #{tpu_custom_call.1}
  #allocation0 [shape = 'u32[]', space=smem, size = 0x4, offset = 0x4, fixed_abs, tag = 'smem constant byte address 0x4 - core index']
  #allocation1 [shape = 'u32[144,128]{1,0:T(1,128)}', space=vmem, size = 0x12000, scoped, tag = 'internal scratch']
  %s0 = inlined_call_operand.vmem [shape: f32[2,4,16], index: 0, kind: input, shape index: {}]
  %s1 = inlined_call_operand.vmem [shape: f32[32,4], index: 1, kind: input, shape index: {}]
  %s2 = inlined_call_operand.vmem [shape: f32[32,1], index: 2, kind: input, shape index: {}]
  %s3 = inlined_call_operand.vmem [shape: f32[4,32], index: 3, kind: input, shape index: {}]
  %s4 = inlined_call_operand.vmem [shape: f32[4,1], index: 4, kind: input, shape index: {}]
  %s5 = inlined_call_operand.hbm [shape: f32[2,4,16], index: 5, kind: output, shape index: {}]
  %s6 = sld [smem:[#allocation0]]
  $region30: #{tpu_custom_call.1} parent=0
    _
  %s8 = ssub.s32 1, %s6
  %s9 = scalar_select 0, %s8, %s6
  $region1: #{tpu_custom_call.1} parent=0
    #allocation2 [shape = 'u8[4096]{0}', space=vmem, size = 0x1000, scoped, tag = 'output window, operand 0, single buffered']
    #allocation3 [shape = 's32[1]{0}', space=sflag, size = 0x4, scoped, tag = 'scoped memory for tpu_custom_call.1']
    %10 = vsyncpa [#allocation3], 0
    // Predicated region
    $region2: #{tpu_custom_call.1} parent=1 // pred_check
      _
    $region3: #{tpu_custom_call.1} parent=1 // pred_check_branch
      %12 = sbr.rel (0) target = $region5
    $region4: #{tpu_custom_call.1} parent=1 // pred_region
      _
    $region5: #{tpu_custom_call.1} parent=1 // pred_fallthru
      _
    // Predicated region
    $region6: #{tpu_custom_call.1} parent=1 // pred_check
      _
    $region7: #{tpu_custom_call.1} parent=1 // pred_check_branch
      %14 = sbr.rel (0) target = $region9
    $region8: #{tpu_custom_call.1} parent=1 // pred_region
      _
    $region9: #{tpu_custom_call.1} parent=1 // pred_fallthru
      _
    // Predicated region
    $region10: #{tpu_custom_call.1} parent=1 // pred_check
      _
    $region11: #{tpu_custom_call.1} parent=1 // pred_check_branch
      %16 = sbr.rel (0) target = $region13
    $region12: #{tpu_custom_call.1} parent=1 // pred_region
      _
    $region13: #{tpu_custom_call.1} parent=1 // pred_fallthru
      _
    // Predicated region
    $region14: #{tpu_custom_call.1} parent=1 // pred_check
      _
    $region15: #{tpu_custom_call.1} parent=1 // pred_check_branch
      %18 = sbr.rel (0) target = $region17
    $region16: #{tpu_custom_call.1} parent=1 // pred_region
      _
    $region17: #{tpu_custom_call.1} parent=1 // pred_fallthru
      _
    // Predicated region
    $region18: #{tpu_custom_call.1} parent=1 // pred_check
      _
    $region19: #{tpu_custom_call.1} parent=1 // pred_check_branch
      %20 = sbr.rel (0) target = $region21
    $region20: #{tpu_custom_call.1} parent=1 // pred_region
      _
    $region21: #{tpu_custom_call.1} parent=1 // pred_fallthru
      _
    %v21 = vld [vmem:[%s1] sm:$0xff]
    %v22 = vld [vmem:[%s1 + $0x8] sm:$0xff]
    %v23 = vld [vmem:[%s1 + $0x10] sm:$0xff]
    %v24 = vld [vmem:[%s1 + $0x18] sm:$0xff]
    %v25 = vld [vmem:[%s2] sm:$0xff]
    %v26 = vld [vmem:[%s2 + $0x8] sm:$0xff]
    %v27 = vld [vmem:[%s2 + $0x10] sm:$0xff]
    %v28 = vld [vmem:[%s2 + $0x18] sm:$0xff]
    %v29 = vld [vmem:[%s3] sm:$0xf]
    %v30 = vld [vmem:[%s4] sm:$0xf]
    %v31 = vld [vmem:[%s0] sm:$0xf]
    %33 = vset.pattern.permute.xlu0 0
    %34 = vperm.xlu0 %33, %v25
    %v35 = vpop.permute.xlu0 %34
    %38 = vset.pattern.permute.xlu0 0
    %39 = vperm.xlu0 %38, %v26
    %v40 = vpop.permute.xlu0 %39
    %43 = vset.pattern.permute.xlu0 0
    %44 = vperm.xlu0 %43, %v27
    %v45 = vpop.permute.xlu0 %44
    %48 = vset.pattern.permute.xlu0 0
    %49 = vperm.xlu0 %48, %v28
    %v50 = vpop.permute.xlu0 %49
    %vm52 = vcmask 31744
    %v54 = vsel %vm52, %v21, 0
    %v57 = vsel %vm52, %v22, 0
    %v60 = vsel %vm52, %v23, 0
    %v63 = vsel %vm52, %v24, 0
    %vm65 = vcmask 1043456
    %v67 = vsel %vm65, %v31, 0
    %69 = vmatprep.subr.mxu0 0.0
    %70 = vmatpush1.msra.mxu0 %v67
    %71 = vmatprep.subr.mxu0 0.0
    %72 = vmatpush1.msra.mxu0 0.0
    %73 = vmatprep.subr.mxu0 0.0
    %74 = vmatpush1.msra.mxu0 0.0
    %75 = vmatprep.subr.mxu0 0.0
    %76 = vmatpush1.msra.mxu0 0.0
    %77 = vmatprep.subr.mxu0 0.0
    %78 = vmatpush1.msra.mxu0 0.0
    %79 = vmatprep.subr.mxu0 0.0
    %80 = vmatpush1.msra.mxu0 0.0
    %81 = vmatprep.subr.mxu0 0.0
    %82 = vmatpush1.msra.mxu0 0.0
    %83 = vmatprep.subr.mxu0 0.0
    %84 = vmatpush1.msra.mxu0 0.0
    %85 = vmatprep.subr.mxu0 0.0
    %86 = vmatpush1.msra.mxu0 0.0
    %87 = vmatprep.subr.mxu0 0.0
    %88 = vmatpush1.msra.mxu0 0.0
    %89 = vmatprep.subr.mxu0 0.0
    %90 = vmatpush1.msra.mxu0 0.0
    %91 = vmatprep.subr.mxu0 0.0
    %92 = vmatpush1.msra.mxu0 0.0
    %93 = vmatprep.subr.mxu0 0.0
    %94 = vmatpush1.msra.mxu0 0.0
    %95 = vmatprep.subr.mxu0 0.0
    %96 = vmatpush1.msra.mxu0 0.0
    %97 = vmatprep.subr.mxu0 0.0
    %98 = vmatpush1.msra.mxu0 0.0
    %99 = vmatprep.subr.mxu0 0.0
    %100 = vmatpush1.msra.mxu0 0.0
    %101 = vmatprep.subr.mxu0 0.0
    %102 = vmatpush1.msra.mxu0 0.0
    %103 = vmatprep.subr.mxu0 0.0
    %104 = vmatpush1.msra.mxu0 0.0
    %105 = vmatprep.subr.mxu0 0.0
    %106 = vmatpush1.msra.mxu0 0.0
    %107 = vmatprep.subr.mxu0 0.0
    %108 = vmatpush1.msra.mxu0 0.0
    %109 = vmatprep.subr.mxu0 0.0
    %110 = vmatpush1.msra.mxu0 0.0
    %111 = vmatprep.subr.mxu0 0.0
    %112 = vmatpush1.msra.mxu0 0.0
    %113 = vmatprep.subr.mxu0 0.0
    %114 = vmatpush1.msra.mxu0 0.0
    %115 = vmatprep.subr.mxu0 0.0
    %116 = vmatpush1.msra.mxu0 0.0
    %117 = vmatprep.subr.mxu0 0.0
    %118 = vmatpush1.msra.mxu0 0.0
    %119 = vmatprep.subr.mxu0 0.0
    %120 = vmatpush1.msra.mxu0 0.0
    %121 = vmatprep.subr.mxu0 0.0
    %122 = vmatpush1.msra.mxu0 0.0
    %123 = vmatprep.subr.mxu0 0.0
    %124 = vmatpush1.msra.mxu0 0.0
    %125 = vmatprep.subr.mxu0 0.0
    %126 = vmatpush1.msra.mxu0 0.0
    %127 = vmatprep.subr.mxu0 0.0
    %128 = vmatpush1.msra.mxu0 0.0
    %129 = vmatprep.subr.mxu0 0.0
    %130 = vmatpush1.msra.mxu0 0.0
    %131 = vmatprep.subr.mxu0 0.0
    %132 = vmatpush1.msra.mxu0 0.0
    %133 = vmatprep.mubr.f32.mxu0 0.0
    %134 = vmatmul.mubr.f32.gmra.mrb[0].mxu0 %v54
    %v135 = vpop.f32.mrb[0].mxu0
    %v136 = vadd.f32 %v35, %v135
    %v137 = vpop.f32.mrb[0].mxu0
    %138 = vmatprep.mubr.f32.mxu0 0.0
    %139 = vmatmul.mubr.f32.gmra.mrb[0].mxu0 %v57
    %v140 = vpop.f32.mrb[0].mxu0
    %v141 = vadd.f32 %v40, %v140
    %v142 = vpop.f32.mrb[0].mxu0
    %143 = vmatprep.mubr.f32.mxu0 0.0
    %144 = vmatmul.mubr.f32.gmra.mrb[0].mxu0 %v60
    %v145 = vpop.f32.mrb[0].mxu0
    %v146 = vadd.f32 %v45, %v145
    %v147 = vpop.f32.mrb[0].mxu0
    %148 = vmatprep.mubr.f32.mxu0 0.0
    %149 = vmatmul.mubr.f32.gmra.mrb[0].mxu0 %v63
    %v150 = vpop.f32.mrb[0].mxu0
    %v151 = vadd.f32 %v50, %v150
    %v152 = vpop.f32.mrb[0].mxu0
    %153 = vdwg.mxu0
    %v154 = vmax.f32 %v136, 0.0
    %v155 = vmax.f32 %v141, 0.0
    %v156 = vmax.f32 %v146, 0.0
    %v157 = vmax.f32 %v151, 0.0
    %159 = vset.pattern.permute.xlu0 0
    %160 = vperm.xlu0 %159, %v30
    %v161 = vpop.permute.xlu0 %160
    %vm163 = vcmask 261120
    %v165 = vsel %vm163, %v29, 0
    %167 = vmatprep.subr.mxu0 0.0
    %168 = vmatpush1.msra.mxu0 %v154
    %169 = vmatprep.subr.mxu0 0.0
    %170 = vmatpush1.msra.mxu0 %v155
    %171 = vmatprep.subr.mxu0 0.0
    %172 = vmatpush1.msra.mxu0 %v156
    %173 = vmatprep.subr.mxu0 0.0
    %174 = vmatpush1.msra.mxu0 %v157
    %175 = vmatprep.subr.mxu0 0.0
    %176 = vmatpush1.msra.mxu0 0.0
    %177 = vmatprep.subr.mxu0 0.0
    %178 = vmatpush1.msra.mxu0 0.0
    %179 = vmatprep.subr.mxu0 0.0
    %180 = vmatpush1.msra.mxu0 0.0
    %181 = vmatprep.subr.mxu0 0.0
    %182 = vmatpush1.msra.mxu0 0.0
    %183 = vmatprep.subr.mxu0 0.0
    %184 = vmatpush1.msra.mxu0 0.0
    %185 = vmatprep.subr.mxu0 0.0
    %186 = vmatpush1.msra.mxu0 0.0
    %187 = vmatprep.subr.mxu0 0.0
    %188 = vmatpush1.msra.mxu0 0.0
    %189 = vmatprep.subr.mxu0 0.0
    %190 = vmatpush1.msra.mxu0 0.0
    %191 = vmatprep.subr.mxu0 0.0
    %192 = vmatpush1.msra.mxu0 0.0
    %193 = vmatprep.subr.mxu0 0.0
    %194 = vmatpush1.msra.mxu0 0.0
    %195 = vmatprep.subr.mxu0 0.0
    %196 = vmatpush1.msra.mxu0 0.0
    %197 = vmatprep.subr.mxu0 0.0
    %198 = vmatpush1.msra.mxu0 0.0
    %199 = vmatprep.subr.mxu0 0.0
    %200 = vmatpush1.msra.mxu0 0.0
    %201 = vmatprep.subr.mxu0 0.0
    %202 = vmatpush1.msra.mxu0 0.0
    %203 = vmatprep.subr.mxu0 0.0
    %204 = vmatpush1.msra.mxu0 0.0
    %205 = vmatprep.subr.mxu0 0.0
    %206 = vmatpush1.msra.mxu0 0.0
    %207 = vmatprep.subr.mxu0 0.0
    %208 = vmatpush1.msra.mxu0 0.0
    %209 = vmatprep.subr.mxu0 0.0
    %210 = vmatpush1.msra.mxu0 0.0
    %211 = vmatprep.subr.mxu0 0.0
    %212 = vmatpush1.msra.mxu0 0.0
    %213 = vmatprep.subr.mxu0 0.0
    %214 = vmatpush1.msra.mxu0 0.0
    %215 = vmatprep.subr.mxu0 0.0
    %216 = vmatpush1.msra.mxu0 0.0
    %217 = vmatprep.subr.mxu0 0.0
    %218 = vmatpush1.msra.mxu0 0.0
    %219 = vmatprep.subr.mxu0 0.0
    %220 = vmatpush1.msra.mxu0 0.0
    %221 = vmatprep.subr.mxu0 0.0
    %222 = vmatpush1.msra.mxu0 0.0
    %223 = vmatprep.subr.mxu0 0.0
    %224 = vmatpush1.msra.mxu0 0.0
    %225 = vmatprep.subr.mxu0 0.0
    %226 = vmatpush1.msra.mxu0 0.0
    %227 = vmatprep.subr.mxu0 0.0
    %228 = vmatpush1.msra.mxu0 0.0
    %229 = vmatprep.subr.mxu0 0.0
    %230 = vmatpush1.msra.mxu0 0.0
    %231 = vmatprep.mubr.f32.mxu0 0.0
    %232 = vmatmul.mubr.f32.gmra.mrb[0].mxu0 %v165
    %v233 = vpop.f32.mrb[0].mxu0
    %v234 = vadd.f32 %v161, %v233
    %v235 = vpop.f32.mrb[0].mxu0
    %236 = vdwg.mxu0
    %v237 = vadd.f32 %v234, %v31
    %vm238 = vcmask 125952
    %239 = vst.msk [vmem:[#allocation2] sm:$0xf] %vm238, %v237
    %s240 = scalar_lea.vmem %s0, 4
    %v241 = vld [vmem:[%s240] sm:$0xf]
    %v243 = vsel %vm65, %v241, 0
    %245 = vmatprep.subr.mxu0 0.0
    %246 = vmatpush1.msra.mxu0 %v243
    %247 = vmatprep.subr.mxu0 0.0
    %248 = vmatpush1.msra.mxu0 0.0
    %249 = vmatprep.subr.mxu0 0.0
    %250 = vmatpush1.msra.mxu0 0.0
    %251 = vmatprep.subr.mxu0 0.0
    %252 = vmatpush1.msra.mxu0 0.0
    %253 = vmatprep.subr.mxu0 0.0
    %254 = vmatpush1.msra.mxu0 0.0
    %255 = vmatprep.subr.mxu0 0.0
    %256 = vmatpush1.msra.mxu0 0.0
    %257 = vmatprep.subr.mxu0 0.0
    %258 = vmatpush1.msra.mxu0 0.0
    %259 = vmatprep.subr.mxu0 0.0
    %260 = vmatpush1.msra.mxu0 0.0
    %261 = vmatprep.subr.mxu0 0.0
    %262 = vmatpush1.msra.mxu0 0.0
    %263 = vmatprep.subr.mxu0 0.0
    %264 = vmatpush1.msra.mxu0 0.0
    %265 = vmatprep.subr.mxu0 0.0
    %266 = vmatpush1.msra.mxu0 0.0
    %267 = vmatprep.subr.mxu0 0.0
    %268 = vmatpush1.msra.mxu0 0.0
    %269 = vmatprep.subr.mxu0 0.0
    %270 = vmatpush1.msra.mxu0 0.0
    %271 = vmatprep.subr.mxu0 0.0
    %272 = vmatpush1.msra.mxu0 0.0
    %273 = vmatprep.subr.mxu0 0.0
    %274 = vmatpush1.msra.mxu0 0.0
    %275 = vmatprep.subr.mxu0 0.0
    %276 = vmatpush1.msra.mxu0 0.0
    %277 = vmatprep.subr.mxu0 0.0
    %278 = vmatpush1.msra.mxu0 0.0
    %279 = vmatprep.subr.mxu0 0.0
    %280 = vmatpush1.msra.mxu0 0.0
    %281 = vmatprep.subr.mxu0 0.0
    %282 = vmatpush1.msra.mxu0 0.0
    %283 = vmatprep.subr.mxu0 0.0
    %284 = vmatpush1.msra.mxu0 0.0
    %285 = vmatprep.subr.mxu0 0.0
    %286 = vmatpush1.msra.mxu0 0.0
    %287 = vmatprep.subr.mxu0 0.0
    %288 = vmatpush1.msra.mxu0 0.0
    %289 = vmatprep.subr.mxu0 0.0
    %290 = vmatpush1.msra.mxu0 0.0
    %291 = vmatprep.subr.mxu0 0.0
    %292 = vmatpush1.msra.mxu0 0.0
    %293 = vmatprep.subr.mxu0 0.0
    %294 = vmatpush1.msra.mxu0 0.0
    %295 = vmatprep.subr.mxu0 0.0
    %296 = vmatpush1.msra.mxu0 0.0
    %297 = vmatprep.subr.mxu0 0.0
    %298 = vmatpush1.msra.mxu0 0.0
    %299 = vmatprep.subr.mxu0 0.0
    %300 = vmatpush1.msra.mxu0 0.0
    %301 = vmatprep.subr.mxu0 0.0
    %302 = vmatpush1.msra.mxu0 0.0
    %303 = vmatprep.subr.mxu0 0.0
    %304 = vmatpush1.msra.mxu0 0.0
    %305 = vmatprep.subr.mxu0 0.0
    %306 = vmatpush1.msra.mxu0 0.0
    %307 = vmatprep.subr.mxu0 0.0
    %308 = vmatpush1.msra.mxu0 0.0
    %309 = vmatprep.mubr.f32.mxu0 0.0
    %310 = vmatmul.mubr.f32.gmra.mrb[0].mxu0 %v54
    %v311 = vpop.f32.mrb[0].mxu0
    %v312 = vadd.f32 %v35, %v311
    %v313 = vpop.f32.mrb[0].mxu0
    %314 = vmatprep.mubr.f32.mxu0 0.0
    %315 = vmatmul.mubr.f32.gmra.mrb[0].mxu0 %v57
    %v316 = vpop.f32.mrb[0].mxu0
    %v317 = vadd.f32 %v40, %v316
    %v318 = vpop.f32.mrb[0].mxu0
    %319 = vmatprep.mubr.f32.mxu0 0.0
    %320 = vmatmul.mubr.f32.gmra.mrb[0].mxu0 %v60
    %v321 = vpop.f32.mrb[0].mxu0
    %v322 = vadd.f32 %v45, %v321
    %v323 = vpop.f32.mrb[0].mxu0
    %324 = vmatprep.mubr.f32.mxu0 0.0
    %325 = vmatmul.mubr.f32.gmra.mrb[0].mxu0 %v63
    %v326 = vpop.f32.mrb[0].mxu0
    %v327 = vadd.f32 %v50, %v326
    %v328 = vpop.f32.mrb[0].mxu0
    %329 = vdwg.mxu0
    %v330 = vmax.f32 %v312, 0.0
    %v331 = vmax.f32 %v317, 0.0
    %v332 = vmax.f32 %v322, 0.0
    %v333 = vmax.f32 %v327, 0.0
    %334 = vmatprep.subr.mxu0 0.0
    %335 = vmatpush1.msra.mxu0 %v330
    %336 = vmatprep.subr.mxu0 0.0
    %337 = vmatpush1.msra.mxu0 %v331
    %338 = vmatprep.subr.mxu0 0.0
    %339 = vmatpush1.msra.mxu0 %v332
    %340 = vmatprep.subr.mxu0 0.0
    %341 = vmatpush1.msra.mxu0 %v333
    %342 = vmatprep.subr.mxu0 0.0
    %343 = vmatpush1.msra.mxu0 0.0
    %344 = vmatprep.subr.mxu0 0.0
    %345 = vmatpush1.msra.mxu0 0.0
    %346 = vmatprep.subr.mxu0 0.0
    %347 = vmatpush1.msra.mxu0 0.0
    %348 = vmatprep.subr.mxu0 0.0
    %349 = vmatpush1.msra.mxu0 0.0
    %350 = vmatprep.subr.mxu0 0.0
    %351 = vmatpush1.msra.mxu0 0.0
    %352 = vmatprep.subr.mxu0 0.0
    %353 = vmatpush1.msra.mxu0 0.0
    %354 = vmatprep.subr.mxu0 0.0
    %355 = vmatpush1.msra.mxu0 0.0
    %356 = vmatprep.subr.mxu0 0.0
    %357 = vmatpush1.msra.mxu0 0.0
    %358 = vmatprep.subr.mxu0 0.0
    %359 = vmatpush1.msra.mxu0 0.0
    %360 = vmatprep.subr.mxu0 0.0
    %361 = vmatpush1.msra.mxu0 0.0
    %362 = vmatprep.subr.mxu0 0.0
    %363 = vmatpush1.msra.mxu0 0.0
    %364 = vmatprep.subr.mxu0 0.0
    %365 = vmatpush1.msra.mxu0 0.0
    %366 = vmatprep.subr.mxu0 0.0
    %367 = vmatpush1.msra.mxu0 0.0
    %368 = vmatprep.subr.mxu0 0.0
    %369 = vmatpush1.msra.mxu0 0.0
    %370 = vmatprep.subr.mxu0 0.0
    %371 = vmatpush1.msra.mxu0 0.0
    %372 = vmatprep.subr.mxu0 0.0
    %373 = vmatpush1.msra.mxu0 0.0
    %374 = vmatprep.subr.mxu0 0.0
    %375 = vmatpush1.msra.mxu0 0.0
    %376 = vmatprep.subr.mxu0 0.0
    %377 = vmatpush1.msra.mxu0 0.0
    %378 = vmatprep.subr.mxu0 0.0
    %379 = vmatpush1.msra.mxu0 0.0
    %380 = vmatprep.subr.mxu0 0.0
    %381 = vmatpush1.msra.mxu0 0.0
    %382 = vmatprep.subr.mxu0 0.0
    %383 = vmatpush1.msra.mxu0 0.0
    %384 = vmatprep.subr.mxu0 0.0
    %385 = vmatpush1.msra.mxu0 0.0
    %386 = vmatprep.subr.mxu0 0.0
    %387 = vmatpush1.msra.mxu0 0.0
    %388 = vmatprep.subr.mxu0 0.0
    %389 = vmatpush1.msra.mxu0 0.0
    %390 = vmatprep.subr.mxu0 0.0
    %391 = vmatpush1.msra.mxu0 0.0
    %392 = vmatprep.subr.mxu0 0.0
    %393 = vmatpush1.msra.mxu0 0.0
    %394 = vmatprep.subr.mxu0 0.0
    %395 = vmatpush1.msra.mxu0 0.0
    %396 = vmatprep.subr.mxu0 0.0
    %397 = vmatpush1.msra.mxu0 0.0
    %398 = vmatprep.mubr.f32.mxu0 0.0
    %399 = vmatmul.mubr.f32.gmra.mrb[0].mxu0 %v165
    %v400 = vpop.f32.mrb[0].mxu0
    %v401 = vadd.f32 %v161, %v400
    %v402 = vpop.f32.mrb[0].mxu0
    %403 = vdwg.mxu0
    %v404 = vadd.f32 %v401, %v241
    %s405 = scalar_lea.vmem [#allocation2], 4
    %406 = vst.msk [vmem:[%s405] sm:$0xf] %vm238, %v404
    // Predicated region
    $region22: #{tpu_custom_call.1} parent=1 // pred_check
      _
    $region23: #{tpu_custom_call.1} parent=1 // pred_check_branch
      %408 = sbr.rel (0) target = $region25
    $region24: #{tpu_custom_call.1} parent=1 // pred_region
      %s410 = ssub.s32 128, 128
      %411 = vsyncadd [#allocation3], %s410
      %s412 = sshll.u32 [#allocation2], 4
      %s413 = int_to_ptr.vmem [resolvable:$true] %s412
      %418 = dma.vmem_to_hbm [thread:$0]  %s413, 128, %s5, [#allocation3], 64, 64, 4
    $region25: #{tpu_custom_call.1} parent=1 // pred_fallthru
      _
    // Predicated region
    $region26: #{tpu_custom_call.1} parent=1 // pred_check
      _
    $region27: #{tpu_custom_call.1} parent=1 // pred_check_branch
      %420 = sbr.rel (0) target = $region29
    $region28: #{tpu_custom_call.1} parent=1 // pred_region
      %421 = dma.done [#allocation3], 128
    $region29: #{tpu_custom_call.1} parent=1 // pred_fallthru
      _
    %422 = vsyncpa [#allocation3], 1

</llo_original>
